<compile_context>
chip_gen: v6e
topology: v6e:2x2x1
jax: 0.10.0
libtpu: 0.0.40
codegen_flags: <defaults>
</compile_context>

<pallas_src>
import functools

import jax
import jax.numpy as jnp
from jax.experimental import pallas as pl
from jax.experimental.pallas import tpu as pltpu


_LANE = 128
_SUBLANE = 8
_NEG_INF = jnp.float32(-1e30)   # padded-class bias -> softmax contribution == 0


def _round_up(x: int, m: int) -> int:
    return ((x + m - 1) // m) * m


@functools.lru_cache(maxsize=1)
def _default_vmem_budget_bytes() -> int:
    """Generation-aware VMEM budget: ~75% of physical (v5e/v6e 128 MiB, v7x 64 MiB)."""
    cap = None
    try:
        cap = int(getattr(pltpu.get_tpu_info(), "vmem_capacity_bytes", 0)) or None
    except Exception:
        cap = None
    if cap is None:
        cap = 64 * 1024 * 1024          # conservative (v7x-sized) fallback
    return (cap * 3) // 4


def _emit_pathway_accum(r, x_ref, ps_ref, tl, thw):
    """Fold the valid lanes of this pathway's current THW block into its partial sum.

    The (n_tile, C_p, 128) partial-sum scratch is updated with element-wise adds only
    (no per-step cross-lane XLU reduce); the ragged tail of the last block is handled
    with aligned 128-lane chunks plus one sub-128-lane masked add, so garbage from
    out-of-bounds block elements never enters the sum.
    """
    full_steps = thw // tl               # steps whose block is entirely valid
    rem = thw - full_steps * tl          # valid lanes of the final (ragged) block

    def fold(valid):
        nfull = valid // _LANE
        tail = valid - nfull * _LANE
        if nfull:
            total = x_ref[:, :, 0:_LANE].astype(jnp.float32)
            for j in range(1, nfull):
                total = total + x_ref[:, :, j * _LANE:(j + 1) * _LANE].astype(jnp.float32)
            ps_ref[...] += total
        if tail:
            s = nfull * _LANE            # 128-aligned start, width < 128 (masked RMW)
            ps_ref[:, :, 0:tail] += x_ref[:, :, s:s + tail].astype(jnp.float32)

    if full_steps:
        @pl.when(r < full_steps)
        def _():
            fold(tl)

    if rem:
        @pl.when(r == full_steps)
        def _():
            fold(rem)


def _make_head_kernel(num_pathways, n_tile, k_pad, tls, thws):
    """Fused (streamed avg-pool) + projection + softmax kernel."""
    P = num_pathways

    def kernel(*refs):
        # refs = (x_0..x_{P-1}, w_0..w_{P-1}, bias, out, psum_0..psum_{P-1})
        x_refs = refs[:P]
        w_refs = refs[P:2 * P]
        b_ref = refs[2 * P]
        o_ref = refs[2 * P + 1]
        ps_refs = refs[2 * P + 2:]

        r = pl.program_id(1)

        @pl.when(r == 0)
        def _init():
            for ps in ps_refs:
                ps[...] = jnp.zeros_like(ps)

        # Hot loop: native-dtype -> f32 cast + element-wise partial-sum accumulation
        # under the DMA shadow (1/THW is folded into the projection weights).
        for p in range(P):
            _emit_pathway_accum(r, x_refs[p], ps_refs[p], tls[p], thws[p])

        @pl.when(r == pl.num_programs(1) - 1)
        def _finalize():
            # logits = bias + sum_p pooled_p @ W_p   (split matmul per pathway)
            logits = jnp.broadcast_to(b_ref[...], (n_tile, k_pad))
            for p in range(P):
                pooled = jnp.sum(ps_refs[p][...], axis=-1)       # one XLU reduce / row
                logits = logits + jnp.dot(pooled, w_refs[p][...],
                                          preferred_element_type=jnp.float32)
            # Softmax over classes (padded classes carry a -1e30 bias -> exactly 0).
            m = jnp.max(logits, axis=-1, keepdims=True)
            e = jnp.exp(logits - m)
            denom = jnp.sum(e, axis=-1, keepdims=True)
            inv = pl.reciprocal(denom, approx=True)              # EUP slot
            inv = inv * (2.0 - denom * inv)                      # one Newton step -> ~f32 exact
            o_ref[...] = (e * inv).astype(o_ref.dtype)

    return kernel


@functools.partial(jax.jit, static_argnames=("vmem_budget_bytes", "max_thw_tile"))
def resnet_basic_head(inputs, w, b, *, vmem_budget_bytes=None, max_thw_tile=None):
    """Eval-mode ResNetBasicHead forward.

    Args:
      inputs: tuple of per-pathway tensors, each (N, C_p, T_p, H_p, W_p), native dtype.
      w: projection weight, shape (sum(C_p), num_classes) (== nn.Linear.weight.T).
      b: projection bias, shape (num_classes,).
      vmem_budget_bytes: optional override of the generation-derived VMEM budget.
      max_thw_tile: optional cap on the per-pathway THW tile (mainly for exercising the
        multi-step / ragged-tail / clamped-pathway paths).
    Returns:
      (N, num_classes) float32 softmax probabilities.
    """
    num_pathways = len(inputs)
    n = int(inputs[0].shape[0])
    c_in = [int(x.shape[1]) for x in inputs]
    thws = [int(x.shape[2]) * int(x.shape[3]) * int(x.shape[4]) for x in inputs]
    iszs = [jnp.dtype(x.dtype).itemsize for x in inputs]
    c_total = sum(c_in)
    k = int(w.shape[1])
    assert int(w.shape[0]) == c_total, "weight rows must equal sum(dim_in)"

    k_pad = _round_up(k, _LANE)          # lane-dense output stores
    budget = int(vmem_budget_bytes) if vmem_budget_bytes else _default_vmem_budget_bytes()

    # ---- batch tile: output block sublane dim must be a multiple of 8 or equal n -----
    if n <= 8:
        # TODO(synk): n <= 8 leaves a single 'parallel' batch tile, so v7x's second
        #             TensorCore idles; splitting the reduction per-core would need
        #             per-core partial accumulators combined at finalize.
        nt_cands = [n]
    else:
        nt_cands = [t for t in (16, 8) if n >= t]
        multi = [t for t in nt_cands if -(-n // t) >= 2]      # keep both v7x TCs busy
        if multi:
            nt_cands = multi

    # ---- THW tile candidates: prefer full extent; shrink n_tile before the THW tile --
    cap = None
    if max_thw_tile is not None:
        cap = max(_LANE, (int(max_thw_tile) // _LANE) * _LANE)

    def tls_for(split):
        tls = []
        for thw in thws:
            tl = thw if split <= 1 else _round_up(-(-thw // split), _LANE)
            if cap is not None:
                tl = min(tl, cap)
            tls.append(thw if tl >= thw else tl)              # full extent => exactly thw
        return tls

    # Honest VMEM accounting: double-buffered activations, double-buffered resident
    # weights/bias (constant index_map still gets 2 buffers), psum scratch, double-
    # buffered output block, and small finalize temporaries.
    # TODO(synk): pipeline_mode=pl.Buffered(1) on the weight/bias specs would halve
    #             their footprint; kept default-buffered for compile safety.
    wgt_bytes = 2 * 4 * (sum(_round_up(c, _SUBLANE) * k_pad for c in c_in)
                         + _SUBLANE * k_pad)

    def vmem_estimate(nt, tls):
        act = sum(2 * nt * _round_up(c, _SUBLANE) * _round_up(tl, _LANE) * isz
                  for c, tl, isz in zip(c_in, tls, iszs))
        psum = sum(nt * _round_up(c, _SUBLANE) * _LANE * 4 for c in c_in)
        outb = 2 * _round_up(nt, _SUBLANE) * k_pad * 4
        fin = nt * (_round_up(c_total, _SUBLANE) + 2 * k_pad) * 4
        return act + wgt_bytes + psum + outb + fin

    max_split = max(1, max(-(-thw // _LANE) for thw in thws))
    split_levels, s = [], 1
    while s < max_split:
        split_levels.append(s)
        s *= 2
    split_levels.append(max_split)                            # all-128 floor is last

    chosen = None
    for split in split_levels:                                # largest THW tile first
        tls = tls_for(split)
        for nt in nt_cands:                                   # shrink n_tile before tl
            if vmem_estimate(nt, tls) <= budget:
                chosen = (nt, tls)
                break
        if chosen is not None:
            break
    if chosen is None:                                        # best effort: smallest config
        chosen = (nt_cands[-1], tls_for(split_levels[-1]))
    n_tile, tls = chosen
    steps = [-(-thw // tl) for thw, tl in zip(thws, tls)]
    k_red = max(steps)
    vmem_limit = int(max(budget, vmem_estimate(n_tile, tls) + (4 << 20)))

    # ---- activations: flatten THW only (free reshape); NO padding / extra HBM copy ---
    flats = [x.reshape(x.shape[0], x.shape[1], -1) for x in inputs]

    # ---- params: split W per pathway, fold 1/THW_p, cast f32, pad class dim ----------
    # TODO(synk): bf16 resident weights would halve their VMEM footprint (v7x); kept f32
    #             so the kernel matches the f32 nn.Linear projection within 1e-4.
    w32 = w.astype(jnp.float32)
    w_parts, off = [], 0
    for c, thw in zip(c_in, thws):
        wp = w32[off:off + c, :] * jnp.float32(1.0 / thw)
        if k_pad != k:
            wp = jnp.pad(wp, ((0, 0), (0, k_pad - k)))
        w_parts.append(wp)
        off += c
    bias = b.astype(jnp.float32).reshape(1, k)
    if k_pad != k:
        bias = jnp.pad(bias, ((0, 0), (0, k_pad - k)), constant_values=_NEG_INF)

    # ---- grid & specs -----------------------------------------------------------------
    grid = (-(-n // n_tile), k_red)

    def _act_spec(c, tl, st):
        def idx(i, r, _st=st):
            # Clamp: pathways with fewer reduction steps keep their last block resident
            # (no re-DMA on the extra steps); the accumulate is pl.when-gated in-kernel.
            return (i, 0, jnp.minimum(r, _st - 1))
        return pl.BlockSpec((n_tile, c, tl), idx)

    in_specs = [_act_spec(c, tl, st) for c, tl, st in zip(c_in, tls, steps)]
    in_specs += [pl.BlockSpec((c, k_pad), lambda i, r: (0, 0)) for c in c_in]  # resident W_p
    in_specs.append(pl.BlockSpec((1, k_pad), lambda i, r: (0, 0)))             # resident bias
    out_spec = pl.BlockSpec((n_tile, k_pad), lambda i, r: (i, 0))
    scratch = [pltpu.VMEM((n_tile, c, _LANE), jnp.float32) for c in c_in]

    kernel = _make_head_kernel(num_pathways, n_tile, k_pad, tuple(tls), tuple(thws))

    out = pl.pallas_call(
        kernel,
        out_shape=jax.ShapeDtypeStruct((n, k_pad), jnp.float32),
        grid_spec=pltpu.PrefetchScalarGridSpec(
            num_scalar_prefetch=0,
            grid=grid,
            in_specs=in_specs,
            out_specs=out_spec,
            scratch_shapes=scratch),
        compiler_params=pltpu.CompilerParams(
            dimension_semantics=("parallel", "arbitrary"),
            vmem_limit_bytes=vmem_limit),
    )(*flats, *w_parts, bias)

    return out[:, :k]


def _reference(inputs, w, b):
    """Pure-JAX reference mirroring the PyTorch forward (eval mode)."""
    pooled = [jnp.mean(x.astype(jnp.float32), axis=(2, 3, 4)) for x in inputs]
    x = jnp.concatenate(pooled, axis=1)
    logits = x @ w.astype(jnp.float32) + b.astype(jnp.float32)
    return jax.nn.softmax(logits, axis=-1)


if __name__ == "__main__":
    key = jax.random.PRNGKey(0)

    # Small SlowFast-like config: 2 pathways, full (T,H,W) pooling, 7x7 spatial so the
    # flattened THW (196 / 392) exercises the unaligned / ragged lane paths.
    N = 2
    dim_in = [8, 4]
    num_classes = 16
    pool_size = [[4, 7, 7], [8, 7, 7]]        # THW = 196 and 392

    k0, k1, kw, kb = jax.random.split(key, 4)
    x_slow = jax.random.normal(k0, (N, dim_in[0], *pool_size[0]), dtype=jnp.float32)
    x_fast = jax.random.normal(k1, (N, dim_in[1], *pool_size[1]), dtype=jnp.float32)

    # nn.Linear(sum(dim_in), num_classes): w is the transpose of torch's weight.
    w = jax.random.normal(kw, (sum(dim_in), num_classes), dtype=jnp.float32) * 0.05
    b = jax.random.normal(kb, (num_classes,), dtype=jnp.float32) * 0.01

    ref = _reference((x_slow, x_fast), w, b)

    # 1) Default tiling: one full-extent (lane-unaligned) THW block per pathway.
    out1 = jax.block_until_ready(resnet_basic_head((x_slow, x_fast), w, b))
    assert out1.shape == (N, num_classes), out1.shape
    assert jnp.allclose(out1, ref, atol=1e-4, rtol=1e-4), (
        f"default-tiling mismatch: max abs err {float(jnp.max(jnp.abs(out1 - ref)))}")

    # 2) Capped THW tile: multi-step reduction with a ragged (masked) tail block and a
    #    clamped per-pathway step count (slow pathway finishes before the grid does).
    out2 = jax.block_until_ready(
        resnet_basic_head((x_slow, x_fast), w, b, max_thw_tile=256))
    assert jnp.allclose(out2, ref, atol=1e-4, rtol=1e-4), (
        f"multi-step mismatch: max abs err {float(jnp.max(jnp.abs(out2 - ref)))}")

    # 3) bf16 activations streamed in native dtype, minimal (128-lane) THW tiles.
    xs_bf, xf_bf = x_slow.astype(jnp.bfloat16), x_fast.astype(jnp.bfloat16)
    ref_bf = _reference((xs_bf, xf_bf), w, b)
    out3 = jax.block_until_ready(
        resnet_basic_head((xs_bf, xf_bf), w, b, max_thw_tile=128))
    assert jnp.allclose(out3, ref_bf, atol=1e-4, rtol=1e-4), (
        f"bf16 mismatch: max abs err {float(jnp.max(jnp.abs(out3 - ref_bf)))}")

    print("KERNEL_OK")
</pallas_src>

<mosaic_0001>
module attributes {stable_mosaic.version = 11 : i64} {
  func.func @kernel(%arg0: i32, %arg1: i32, %arg2: memref<2x8x196xf32, #tpu.memory_space<vmem>>, %arg3: memref<2x4x392xf32, #tpu.memory_space<vmem>>, %arg4: memref<8x128xf32, #tpu.memory_space<vmem>>, %arg5: memref<4x128xf32, #tpu.memory_space<vmem>>, %arg6: memref<1x128xf32, #tpu.memory_space<vmem>>, %arg7: memref<2x128xf32, #tpu.memory_space<vmem>>, %arg8: memref<2x8x128xf32, #tpu.memory_space<vmem>>, %arg9: memref<2x4x128xf32, #tpu.memory_space<vmem>>) attributes {dimension_semantics = [#tpu.dimension_semantics<parallel>, #tpu.dimension_semantics<arbitrary>], iteration_bounds = array<i64: 1, 1>, scalar_prefetch = 0 : i64, scratch_operands = 2 : i64, tpu.core_type = #tpu.core_type<tc>, window_params = [{transform_indices = @transform_0, window_bounds = array<i64: 2, 8, 196>}, {transform_indices = @transform_1, window_bounds = array<i64: 2, 4, 392>}, {pipeline_mode = #tpu.pipeline_mode<synchronous>, transform_indices = @transform_2, window_bounds = array<i64: 8, 128>}, {pipeline_mode = #tpu.pipeline_mode<synchronous>, transform_indices = @transform_3, window_bounds = array<i64: 4, 128>}, {pipeline_mode = #tpu.pipeline_mode<synchronous>, transform_indices = @transform_4, window_bounds = array<i64: 1, 128>}, {transform_indices = @transform_5, window_bounds = array<i64: 2, 128>}]} {
    %c0_i32 = arith.constant 0 : i32
    %0 = arith.cmpi eq, %arg1, %c0_i32 : i32
    %1 = arith.extui %0 : i1 to i32
    %c0_i32_0 = arith.constant 0 : i32
    %2 = arith.cmpi ne, %1, %c0_i32_0 : i32
    scf.if %2 {
      %cst = arith.constant 0.000000e+00 : f32
      %12 = vector.broadcast %cst : f32 to vector<2x8x128xf32>
      %c0 = arith.constant 0 : index
      %c0_6 = arith.constant 0 : index
      %c0_7 = arith.constant 0 : index
      %13 = vector.load %arg8[%c0, %c0_6, %c0_7] : memref<2x8x128xf32, #tpu.memory_space<vmem>>, vector<2x8x128xf32>
      tpu.vector_store %arg8[%c0, %c0_6, %c0_7], %12 {strides = array<i32>} : memref<2x8x128xf32, #tpu.memory_space<vmem>>, vector<2x8x128xf32>,
      %cst_8 = arith.constant 0.000000e+00 : f32
      %14 = vector.broadcast %cst_8 : f32 to vector<2x4x128xf32>
      %c0_9 = arith.constant 0 : index
      %c0_10 = arith.constant 0 : index
      %c0_11 = arith.constant 0 : index
      %15 = vector.load %arg9[%c0_9, %c0_10, %c0_11] : memref<2x4x128xf32, #tpu.memory_space<vmem>>, vector<2x4x128xf32>
      tpu.vector_store %arg9[%c0_9, %c0_10, %c0_11], %14 {strides = array<i32>} : memref<2x4x128xf32, #tpu.memory_space<vmem>>, vector<2x4x128xf32>,
    } else {
    }
    %c1_i32 = arith.constant 1 : i32
    %3 = arith.cmpi slt, %arg1, %c1_i32 : i32
    %4 = arith.extui %3 : i1 to i32
    %c0_i32_1 = arith.constant 0 : i32
    %5 = arith.cmpi ne, %4, %c0_i32_1 : i32
    scf.if %5 {
      %c0 = arith.constant 0 : index
      %c0_6 = arith.constant 0 : index
      %c0_7 = arith.constant 0 : index
      %12 = vector.load %arg2[%c0, %c0_6, %c0_7] : memref<2x8x196xf32, #tpu.memory_space<vmem>>, vector<2x8x128xf32>
      %c0_8 = arith.constant 0 : index
      %c0_9 = arith.constant 0 : index
      %c0_10 = arith.constant 0 : index
      %13 = vector.load %arg8[%c0_8, %c0_9, %c0_10] : memref<2x8x128xf32, #tpu.memory_space<vmem>>, vector<2x8x128xf32>
      %14 = arith.addf %13, %12 : vector<2x8x128xf32>
      %c0_11 = arith.constant 0 : index
      %c0_12 = arith.constant 0 : index
      %c0_13 = arith.constant 0 : index
      %15 = vector.load %arg8[%c0_11, %c0_12, %c0_13] : memref<2x8x128xf32, #tpu.memory_space<vmem>>, vector<2x8x128xf32>
      tpu.vector_store %arg8[%c0_11, %c0_12, %c0_13], %14 {strides = array<i32>} : memref<2x8x128xf32, #tpu.memory_space<vmem>>, vector<2x8x128xf32>,
      %c0_14 = arith.constant 0 : index
      %c0_15 = arith.constant 0 : index
      %c0_16 = arith.constant 0 : index
      %16 = vector.load %arg8[%c0_14, %c0_15, %c0_16] : memref<2x8x128xf32, #tpu.memory_space<vmem>>, vector<2x8x68xf32>
      %c0_17 = arith.constant 0 : index
      %c0_18 = arith.constant 0 : index
      %c128 = arith.constant 128 : index
      %17 = vector.load %arg2[%c0_17, %c0_18, %c128] : memref<2x8x196xf32, #tpu.memory_space<vmem>>, vector<2x8x68xf32>
      %18 = arith.addf %16, %17 : vector<2x8x68xf32>
      %c0_19 = arith.constant 0 : index
      %c0_20 = arith.constant 0 : index
      %c0_21 = arith.constant 0 : index
      %19 = vector.load %arg8[%c0_19, %c0_20, %c0_21] : memref<2x8x128xf32, #tpu.memory_space<vmem>>, vector<2x8x68xf32>
      tpu.vector_store %arg8[%c0_19, %c0_20, %c0_21], %18 {strides = array<i32>} : memref<2x8x128xf32, #tpu.memory_space<vmem>>, vector<2x8x68xf32>,
    } else {
    }
    %c1_i32_2 = arith.constant 1 : i32
    %6 = arith.cmpi slt, %arg1, %c1_i32_2 : i32
    %7 = arith.extui %6 : i1 to i32
    %c0_i32_3 = arith.constant 0 : i32
    %8 = arith.cmpi ne, %7, %c0_i32_3 : i32
    scf.if %8 {
      %c0 = arith.constant 0 : index
      %c0_6 = arith.constant 0 : index
      %c0_7 = arith.constant 0 : index
      %12 = vector.load %arg3[%c0, %c0_6, %c0_7] : memref<2x4x392xf32, #tpu.memory_space<vmem>>, vector<2x4x128xf32>
      %c0_8 = arith.constant 0 : index
      %c0_9 = arith.constant 0 : index
      %c128 = arith.constant 128 : index
      %13 = vector.load %arg3[%c0_8, %c0_9, %c128] : memref<2x4x392xf32, #tpu.memory_space<vmem>>, vector<2x4x128xf32>
      %14 = arith.addf %12, %13 : vector<2x4x128xf32>
      %c0_10 = arith.constant 0 : index
      %c0_11 = arith.constant 0 : index
      %c256 = arith.constant 256 : index
      %15 = vector.load %arg3[%c0_10, %c0_11, %c256] : memref<2x4x392xf32, #tpu.memory_space<vmem>>, vector<2x4x128xf32>
      %16 = arith.addf %14, %15 : vector<2x4x128xf32>
      %c0_12 = arith.constant 0 : index
      %c0_13 = arith.constant 0 : index
      %c0_14 = arith.constant 0 : index
      %17 = vector.load %arg9[%c0_12, %c0_13, %c0_14] : memref<2x4x128xf32, #tpu.memory_space<vmem>>, vector<2x4x128xf32>
      %18 = arith.addf %17, %16 : vector<2x4x128xf32>
      %c0_15 = arith.constant 0 : index
      %c0_16 = arith.constant 0 : index
      %c0_17 = arith.constant 0 : index
      %19 = vector.load %arg9[%c0_15, %c0_16, %c0_17] : memref<2x4x128xf32, #tpu.memory_space<vmem>>, vector<2x4x128xf32>
      tpu.vector_store %arg9[%c0_15, %c0_16, %c0_17], %18 {strides = array<i32>} : memref<2x4x128xf32, #tpu.memory_space<vmem>>, vector<2x4x128xf32>,
      %c0_18 = arith.constant 0 : index
      %c0_19 = arith.constant 0 : index
      %c0_20 = arith.constant 0 : index
      %20 = vector.load %arg9[%c0_18, %c0_19, %c0_20] : memref<2x4x128xf32, #tpu.memory_space<vmem>>, vector<2x4x8xf32>
      %c0_21 = arith.constant 0 : index
      %c0_22 = arith.constant 0 : index
      %c384 = arith.constant 384 : index
      %21 = vector.load %arg3[%c0_21, %c0_22, %c384] : memref<2x4x392xf32, #tpu.memory_space<vmem>>, vector<2x4x8xf32>
      %22 = arith.addf %20, %21 : vector<2x4x8xf32>
      %c0_23 = arith.constant 0 : index
      %c0_24 = arith.constant 0 : index
      %c0_25 = arith.constant 0 : index
      %23 = vector.load %arg9[%c0_23, %c0_24, %c0_25] : memref<2x4x128xf32, #tpu.memory_space<vmem>>, vector<2x4x8xf32>
      tpu.vector_store %arg9[%c0_23, %c0_24, %c0_25], %22 {strides = array<i32>} : memref<2x4x128xf32, #tpu.memory_space<vmem>>, vector<2x4x8xf32>,
    } else {
    }
    %c0_i32_4 = arith.constant 0 : i32
    %9 = arith.cmpi eq, %arg1, %c0_i32_4 : i32
    %10 = arith.extui %9 : i1 to i32
    %c0_i32_5 = arith.constant 0 : i32
    %11 = arith.cmpi ne, %10, %c0_i32_5 : i32
    scf.if %11 {
      %c0 = arith.constant 0 : index
      %c0_6 = arith.constant 0 : index
      %12 = vector.load %arg6[%c0, %c0_6] : memref<1x128xf32, #tpu.memory_space<vmem>>, vector<1x128xf32>
      %13 = vector.shape_cast %12 : vector<1x128xf32> to vector<1x128xf32>
      %14 = vector.broadcast %13 : vector<1x128xf32> to vector<2x128xf32>
      %c0_7 = arith.constant 0 : index
      %c0_8 = arith.constant 0 : index
      %c0_9 = arith.constant 0 : index
      %15 = vector.load %arg8[%c0_7, %c0_8, %c0_9] : memref<2x8x128xf32, #tpu.memory_space<vmem>>, vector<2x8x128xf32>
      %cst = arith.constant dense<0.000000e+00> : vector<2x8xf32>
      %16 = vector.multi_reduction <add>, %15, %cst [2] : vector<2x8x128xf32> to vector<2x8xf32>
      %c0_10 = arith.constant 0 : index
      %c0_11 = arith.constant 0 : index
      %17 = vector.load %arg4[%c0_10, %c0_11] : memref<8x128xf32, #tpu.memory_space<vmem>>, vector<8x128xf32>
      %cst_12 = arith.constant dense<0.000000e+00> : vector<2x128xf32>
      %18 = tpu.matmul %16, %17, %cst_12 {dimension_numbers = #tpu.dot_dimension_numbers<[1], [0], [0], [1], [0, 0, 1, 1], [], []>} : vector<2x8xf32>, vector<8x128xf32>, vector<2x128xf32> -> vector<2x128xf32>
      %19 = arith.addf %14, %18 : vector<2x128xf32>
      %c0_13 = arith.constant 0 : index
      %c0_14 = arith.constant 0 : index
      %c0_15 = arith.constant 0 : index
      %20 = vector.load %arg9[%c0_13, %c0_14, %c0_15] : memref<2x4x128xf32, #tpu.memory_space<vmem>>, vector<2x4x128xf32>
      %cst_16 = arith.constant dense<0.000000e+00> : vector<2x4xf32>
      %21 = vector.multi_reduction <add>, %20, %cst_16 [2] : vector<2x4x128xf32> to vector<2x4xf32>
      %c0_17 = arith.constant 0 : index
      %c0_18 = arith.constant 0 : index
      %22 = vector.load %arg5[%c0_17, %c0_18] : memref<4x128xf32, #tpu.memory_space<vmem>>, vector<4x128xf32>
      %cst_19 = arith.constant dense<0.000000e+00> : vector<2x128xf32>
      %23 = tpu.matmul %21, %22, %cst_19 {dimension_numbers = #tpu.dot_dimension_numbers<[1], [0], [0], [1], [0, 0, 1, 1], [], []>} : vector<2x4xf32>, vector<4x128xf32>, vector<2x128xf32> -> vector<2x128xf32>
      %24 = arith.addf %19, %23 : vector<2x128xf32>
      %cst_20 = arith.constant dense<0xFF800000> : vector<2xf32>
      %25 = vector.multi_reduction <maximumf>, %24, %cst_20 [1] : vector<2x128xf32> to vector<2xf32>
      %26 = vector.shape_cast %25 : vector<2xf32> to vector<2x1xf32>
      %27 = vector.broadcast %26 : vector<2x1xf32> to vector<2x128xf32>
      %28 = arith.subf %24, %27 : vector<2x128xf32>
      %29 = math.exp %28 : vector<2x128xf32>
      %cst_21 = arith.constant dense<0.000000e+00> : vector<2xf32>
      %30 = vector.multi_reduction <add>, %29, %cst_21 [1] : vector<2x128xf32> to vector<2xf32>
      %31 = vector.shape_cast %30 : vector<2xf32> to vector<2x1xf32>
      %32 = tpu.reciprocal %31 {approx = true} : vector<2x1xf32> -> vector<2x1xf32>
      %33 = arith.mulf %31, %32 : vector<2x1xf32>
      %cst_22 = arith.constant 2.000000e+00 : f32
      %34 = vector.broadcast %cst_22 : f32 to vector<2x1xf32>
      %35 = arith.subf %34, %33 : vector<2x1xf32>
      %36 = arith.mulf %32, %35 : vector<2x1xf32>
      %37 = vector.broadcast %36 : vector<2x1xf32> to vector<2x128xf32>
      %38 = arith.mulf %29, %37 : vector<2x128xf32>
      %c0_23 = arith.constant 0 : index
      %c0_24 = arith.constant 0 : index
      %39 = vector.load %arg7[%c0_23, %c0_24] : memref<2x128xf32, #tpu.memory_space<vmem>>, vector<2x128xf32>
      tpu.vector_store %arg7[%c0_23, %c0_24], %38 {strides = array<i32>} : memref<2x128xf32, #tpu.memory_space<vmem>>, vector<2x128xf32>,
    } else {
    }
    return
  }
  func.func @transform_0(%arg0: i32, %arg1: i32) -> (i32, i32, i32) {
    %c0_i32 = arith.constant 0 : i32
    %0 = arith.minsi %arg1, %c0_i32 : i32
    %c0_i32_0 = arith.constant 0 : i32
    %c0_i32_1 = arith.constant 0 : i32
    return %arg0, %c0_i32_0, %0 : i32, i32, i32
  }
  func.func @transform_1(%arg0: i32, %arg1: i32) -> (i32, i32, i32) {
    %c0_i32 = arith.constant 0 : i32
    %0 = arith.minsi %arg1, %c0_i32 : i32
    %c0_i32_0 = arith.constant 0 : i32
    %c0_i32_1 = arith.constant 0 : i32
    return %arg0, %c0_i32_0, %0 : i32, i32, i32
  }
  func.func @transform_2(%arg0: i32, %arg1: i32) -> (i32, i32) {
    %c0_i32 = arith.constant 0 : i32
    %c0_i32_0 = arith.constant 0 : i32
    %c0_i32_1 = arith.constant 0 : i32
    return %c0_i32, %c0_i32_0 : i32, i32
  }
  func.func @transform_3(%arg0: i32, %arg1: i32) -> (i32, i32) {
    %c0_i32 = arith.constant 0 : i32
    %c0_i32_0 = arith.constant 0 : i32
    %c0_i32_1 = arith.constant 0 : i32
    return %c0_i32, %c0_i32_0 : i32, i32
  }
  func.func @transform_4(%arg0: i32, %arg1: i32) -> (i32, i32) {
    %c0_i32 = arith.constant 0 : i32
    %c0_i32_0 = arith.constant 0 : i32
    %c0_i32_1 = arith.constant 0 : i32
    return %c0_i32, %c0_i32_0 : i32, i32
  }
  func.func @transform_5(%arg0: i32, %arg1: i32) -> (i32, i32) {
    %c0_i32 = arith.constant 0 : i32
    %c0_i32_0 = arith.constant 0 : i32
    return %arg0, %c0_i32 : i32, i32
  }
}

</mosaic_0001>

<llo_original>
// kernel: resnet_basic_head.1
$region0: #{resnet_basic_head.1}
  #allocation0 [shape = 'u32[]', space=smem, size = 0x4, offset = 0x4, fixed_abs, tag = 'smem constant byte address 0x4 - core index']
  #allocation1 [shape = 'u32[144,128]{1,0:T(1,128)}', space=vmem, size = 0x12000, scoped, tag = 'internal scratch']
  #allocation2 [shape = 'f32[2,8,128]{2,1,0:T(8,128)}', space=vmem, size = 0x2000, scoped, tag = 'scratch operand']
  #allocation3 [shape = 'f32[2,4,128]{2,1,0:T(4,128)}', space=vmem, size = 0x1000, scoped, tag = 'scratch operand']
  %s0 = inlined_call_operand.vmem [shape: f32[2,8,196], index: 0, kind: input, shape index: {}]
  %s1 = inlined_call_operand.vmem [shape: f32[2,4,392], index: 1, kind: input, shape index: {}]
  %s2 = inlined_call_operand.vmem [shape: f32[8,128], index: 2, kind: input, shape index: {}]
  %s3 = inlined_call_operand.vmem [shape: f32[4,128], index: 3, kind: input, shape index: {}]
  %s4 = inlined_call_operand.vmem [shape: f32[1,128], index: 4, kind: input, shape index: {}]
  %s5 = inlined_call_operand.hbm [shape: f32[2,128], index: 5, kind: output, shape index: {}]
  %s6 = sld [smem:[#allocation0]]
  $region42: #{resnet_basic_head.1} parent=0
    _
  %s8 = ssub.s32 1, %s6
  %s9 = scalar_select 0, %s8, %s6
  $region1: #{resnet_basic_head.1} parent=0
    #allocation4 [shape = 'u8[1024]{0}', space=vmem, size = 0x400, scoped, tag = 'output window, operand 0, single buffered']
    #allocation5 [shape = 's32[1]{0}', space=sflag, size = 0x4, scoped, tag = 'scoped memory for resnet_basic_head.1']
    %10 = vsyncpa [#allocation5], 0
    // Predicated region
    $region2: #{resnet_basic_head.1} parent=1 // pred_check
      _
    $region3: #{resnet_basic_head.1} parent=1 // pred_check_branch
      %12 = sbr.rel (0) target = $region5
    $region4: #{resnet_basic_head.1} parent=1 // pred_region
      _
    $region5: #{resnet_basic_head.1} parent=1 // pred_fallthru
      _
    // Predicated region
    $region6: #{resnet_basic_head.1} parent=1 // pred_check
      _
    $region7: #{resnet_basic_head.1} parent=1 // pred_check_branch
      %14 = sbr.rel (0) target = $region9
    $region8: #{resnet_basic_head.1} parent=1 // pred_region
      _
    $region9: #{resnet_basic_head.1} parent=1 // pred_fallthru
      _
    // Predicated region
    $region10: #{resnet_basic_head.1} parent=1 // pred_check
      _
    $region11: #{resnet_basic_head.1} parent=1 // pred_check_branch
      %16 = sbr.rel (0) target = $region13
    $region12: #{resnet_basic_head.1} parent=1 // pred_region
      _
    $region13: #{resnet_basic_head.1} parent=1 // pred_fallthru
      _
    // Predicated region
    $region14: #{resnet_basic_head.1} parent=1 // pred_check
      _
    $region15: #{resnet_basic_head.1} parent=1 // pred_check_branch
      %18 = sbr.rel (0) target = $region17
    $region16: #{resnet_basic_head.1} parent=1 // pred_region
      _
    $region17: #{resnet_basic_head.1} parent=1 // pred_fallthru
      _
    // Predicated region
    $region18: #{resnet_basic_head.1} parent=1 // pred_check
      _
    $region19: #{resnet_basic_head.1} parent=1 // pred_check_branch
      %20 = sbr.rel (0) target = $region21
    $region20: #{resnet_basic_head.1} parent=1 // pred_region
      _
    $region21: #{resnet_basic_head.1} parent=1 // pred_fallthru
      _
    %p21 = scmp.eq.s32.totalorder 0, 0
    // Predicated region
    $region22: #{resnet_basic_head.1} parent=1 // pred_check
      %p22 = pneg %p21
    $region23: #{resnet_basic_head.1} parent=1 // pred_check_branch
      %24 = sbr.rel (%p22) target = $region25
    $region24: #{resnet_basic_head.1} parent=1 // pred_region
      %25 = vst [vmem:[#allocation2] sm:$0xff] 0.0
      %26 = vst [vmem:[#allocation2 + $0x8] sm:$0xff] 0.0
      %27 = vst [vmem:[#allocation3] sm:$0xf] 0.0
      %28 = vst [vmem:[#allocation3 + $0x4] sm:$0xf] 0.0
    $region25: #{resnet_basic_head.1} parent=1 // pred_fallthru
      _
    %p29 = scmp.lt.s32.totalorder 0, 1
    // Predicated region
    $region26: #{resnet_basic_head.1} parent=1 // pred_check
      %p30 = pneg %p29
    $region27: #{resnet_basic_head.1} parent=1 // pred_check_branch
      %32 = sbr.rel (%p30) target = $region29
    $region28: #{resnet_basic_head.1} parent=1 // pred_region
      %v33 = vld [vmem:[%s0] sm:$0xff]
      %v34 = vld [vmem:[%s0 + $0x10] sm:$0xff]
      %v35 = vld [vmem:[#allocation2] sm:$0xff]
      %v36 = vld [vmem:[#allocation2 + $0x8] sm:$0xff]
      %v37 = vadd.f32 %v35, %v33
      %v38 = vadd.f32 %v36, %v34
      %39 = vst [vmem:[#allocation2] sm:$0xff] %v37
      %40 = vst [vmem:[#allocation2 + $0x8] sm:$0xff] %v38
      %v41 = vld [vmem:[#allocation2] sm:$0xff]
      %v42 = vld [vmem:[#allocation2 + $0x8] sm:$0xff]
      %v43 = vld [vmem:[%s0 + $0x8] sm:$0xff]
      %v44 = vld [vmem:[%s0 + $0x18] sm:$0xff]
      %v45 = vadd.f32 %v41, %v43
      %v46 = vadd.f32 %v42, %v44
      %vm47 = vcmask 556032
      %48 = vst.msk [vmem:[#allocation2] sm:$0xff] %vm47, %v45
      %49 = vst.msk [vmem:[#allocation2 + $0x8] sm:$0xff] %vm47, %v46
      %v50 = vld [vmem:[%s1] sm:$0xf]
      %v51 = vld [vmem:[%s1 + $0x10] sm:$0xf]
      %v52 = vld [vmem:[%s1 + $0x4] sm:$0xf]
      %v53 = vld [vmem:[%s1 + $0x14] sm:$0xf]
      %v54 = vadd.f32 %v50, %v52
      %v55 = vadd.f32 %v51, %v53
      %v56 = vld [vmem:[%s1 + $0x8] sm:$0xf]
      %v57 = vld [vmem:[%s1 + $0x18] sm:$0xf]
      %v58 = vadd.f32 %v54, %v56
      %v59 = vadd.f32 %v55, %v57
      %v60 = vld [vmem:[#allocation3] sm:$0xf]
      %v61 = vld [vmem:[#allocation3 + $0x4] sm:$0xf]
      %v62 = vadd.f32 %v60, %v58
      %v63 = vadd.f32 %v61, %v59
      %64 = vst [vmem:[#allocation3] sm:$0xf] %v62
      %65 = vst [vmem:[#allocation3 + $0x4] sm:$0xf] %v63
      %v66 = vld [vmem:[#allocation3] sm:$0xf]
      %v67 = vld [vmem:[#allocation3 + $0x4] sm:$0xf]
      %v68 = vld [vmem:[%s1 + $0xc] sm:$0xf]
      %v69 = vld [vmem:[%s1 + $0x1c] sm:$0xf]
      %v70 = vadd.f32 %v66, %v68
      %v71 = vadd.f32 %v67, %v69
      %vm72 = vcmask 60416
      %73 = vst.msk [vmem:[#allocation3] sm:$0xf] %vm72, %v70
      %74 = vst.msk [vmem:[#allocation3 + $0x4] sm:$0xf] %vm72, %v71
    $region29: #{resnet_basic_head.1} parent=1 // pred_fallthru
      _
    // Predicated region
    $region30: #{resnet_basic_head.1} parent=1 // pred_check
      %p75 = pneg %p21
    $region31: #{resnet_basic_head.1} parent=1 // pred_check_branch
      %77 = sbr.rel (%p75) target = $region33
    $region32: #{resnet_basic_head.1} parent=1 // pred_region
      %v78 = vld [vmem:[%s4] sm:$0x1]
      %v80 = vlaneseq
      %v81 = vshrl.u32 %v80, 7
      %v82 = vsub.s32 0, %v81
      %v83 = vrot.slane %v78, %v82
      %v85 = vld [vmem:[#allocation2] sm:$0xff]
      %v86 = vld [vmem:[#allocation2 + $0x8] sm:$0xff]
      %87 = vadd.xlane.f32.xlu0 %v85
      %v88 = vpop.xlane.xlu0 %87
      %89 = vadd.xlane.f32.xlu0 %v86
      %v90 = vpop.xlane.xlu0 %89
      %v91 = vld [vmem:[%s2] sm:$0xff]
      %v94 = vlaneseq
      %v95 = vand.u32 %v94, 127
      %v96 = vlaneseq
      %v97 = vshrl.u32 %v96, 7
      %v98 = vsub.s32 %v95, %v97
      %v99 = vrot.slane %v88, %v98
      %v100 = vlaneseq
      %v101 = vshrl.u32 %v100, 7
      %v102 = vsub.s32 %v95, %v101
      %v103 = vrot.slane %v90, %v102
      %vm104 = vcmask 1041409
      %v105 = vsel %vm104, %v103, %v99
      %vm106 = vcmask 64512
      %v107 = vsel %vm106, %v105, 0
      %109 = vmatprep.subr.mxu0 0.0
      %110 = vmatpush1.msra.mxu0 0.0
      %111 = vmatprep.subr.mxu0 0.0
      %112 = vmatpush1.msra.mxu0 0.0
      %113 = vmatprep.subr.mxu0 0.0
      %114 = vmatpush1.msra.mxu0 0.0
      %115 = vmatprep.subr.mxu0 0.0
      %116 = vmatpush1.msra.mxu0 0.0
      %117 = vmatprep.subr.mxu0 0.0
      %118 = vmatpush1.msra.mxu0 0.0
      %119 = vmatprep.subr.mxu0 0.0
      %120 = vmatpush1.msra.mxu0 0.0
      %121 = vmatprep.subr.mxu0 0.0
      %122 = vmatpush1.msra.mxu0 0.0
      %123 = vmatprep.subr.mxu0 0.0
      %124 = vmatpush1.msra.mxu0 0.0
      %125 = vmatprep.subr.mxu0 0.0
      %126 = vmatpush1.msra.mxu0 0.0
      %127 = vmatprep.subr.mxu0 0.0
      %128 = vmatpush1.msra.mxu0 0.0
      %129 = vmatprep.subr.mxu0 0.0
      %130 = vmatpush1.msra.mxu0 0.0
      %131 = vmatprep.subr.mxu0 0.0
      %132 = vmatpush1.msra.mxu0 0.0
      %133 = vmatprep.subr.mxu0 0.0
      %134 = vmatpush1.msra.mxu0 0.0
      %135 = vmatprep.subr.mxu0 0.0
      %136 = vmatpush1.msra.mxu0 0.0
      %137 = vmatprep.subr.mxu0 0.0
      %138 = vmatpush1.msra.mxu0 0.0
      %139 = vmatprep.subr.mxu0 0.0
      %140 = vmatpush1.msra.mxu0 %v91
      %141 = vmatprep.subr.mxu0 0.0
      %142 = vmatpush2.msra.mxu0 0.0
      %143 = vmatprep.subr.mxu0 0.0
      %144 = vmatpush2.msra.mxu0 0.0
      %145 = vmatprep.subr.mxu0 0.0
      %146 = vmatpush2.msra.mxu0 0.0
      %147 = vmatprep.subr.mxu0 0.0
      %148 = vmatpush2.msra.mxu0 0.0
      %149 = vmatprep.subr.mxu0 0.0
      %150 = vmatpush2.msra.mxu0 0.0
      %151 = vmatprep.subr.mxu0 0.0
      %152 = vmatpush2.msra.mxu0 0.0
      %153 = vmatprep.subr.mxu0 0.0
      %154 = vmatpush2.msra.mxu0 0.0
      %155 = vmatprep.subr.mxu0 0.0
      %156 = vmatpush2.msra.mxu0 0.0
      %157 = vmatprep.subr.mxu0 0.0
      %158 = vmatpush2.msra.mxu0 0.0
      %159 = vmatprep.subr.mxu0 0.0
      %160 = vmatpush2.msra.mxu0 0.0
      %161 = vmatprep.subr.mxu0 0.0
      %162 = vmatpush2.msra.mxu0 0.0
      %163 = vmatprep.subr.mxu0 0.0
      %164 = vmatpush2.msra.mxu0 0.0
      %165 = vmatprep.subr.mxu0 0.0
      %166 = vmatpush2.msra.mxu0 0.0
      %167 = vmatprep.subr.mxu0 0.0
      %168 = vmatpush2.msra.mxu0 0.0
      %169 = vmatprep.subr.mxu0 0.0
      %170 = vmatpush2.msra.mxu0 0.0
      %171 = vmatprep.subr.mxu0 0.0
      %172 = vmatpush2.msra.mxu0 0.0
      %173 = vmatprep.mubr.f32.mxu0 0.0
      %174 = vmatmul.mubr.f32.gmra.mxu0 %v107
      %v175 = vpop.f32.mrf.mxu0
      %v176 = vadd.f32 0.0, %v175
      %v177 = vpop.f32.mrf.mxu0
      %178 = vdwg.mxu0
      %v179 = vadd.f32 %v83, %v176
      %v180 = vld [vmem:[#allocation3] sm:$0xf]
      %v181 = vld [vmem:[#allocation3 + $0x4] sm:$0xf]
      %vm182 = vcmask 1043456
      %v183 = vsel %vm182, %v180, 0.0
      %184 = vadd.xlane.f32.xlu0 %v183
      %v185 = vpop.xlane.xlu0 %184
      %v186 = vsel %vm182, %v181, 0.0
      %187 = vadd.xlane.f32.xlu0 %v186
      %v188 = vpop.xlane.xlu0 %187
      %v189 = vld [vmem:[%s3] sm:$0xf]
      %v192 = vlaneseq
      %v193 = vshrl.u32 %v192, 7
      %v194 = vsub.s32 %v95, %v193
      %v195 = vrot.slane %v185, %v194
      %v196 = vlaneseq
      %v197 = vshrl.u32 %v196, 7
      %v198 = vsub.s32 %v95, %v197
      %v199 = vrot.slane %v188, %v198
      %v200 = vsel %vm104, %v199, %v195
      %vm201 = vcmask 31744
      %v202 = vsel %vm201, %v200, 0
      %v205 = vsel %vm182, %v189, 0
      %207 = vmatprep.subr.mxu0 0.0
      %208 = vmatpush1.msra.mxu0 0.0
      %209 = vmatprep.subr.mxu0 0.0
      %210 = vmatpush1.msra.mxu0 0.0
      %211 = vmatprep.subr.mxu0 0.0
      %212 = vmatpush1.msra.mxu0 0.0
      %213 = vmatprep.subr.mxu0 0.0
      %214 = vmatpush1.msra.mxu0 0.0
      %215 = vmatprep.subr.mxu0 0.0
      %216 = vmatpush1.msra.mxu0 0.0
      %217 = vmatprep.subr.mxu0 0.0
      %218 = vmatpush1.msra.mxu0 0.0
      %219 = vmatprep.subr.mxu0 0.0
      %220 = vmatpush1.msra.mxu0 0.0
      %221 = vmatprep.subr.mxu0 0.0
      %222 = vmatpush1.msra.mxu0 0.0
      %223 = vmatprep.subr.mxu0 0.0
      %224 = vmatpush1.msra.mxu0 0.0
      %225 = vmatprep.subr.mxu0 0.0
      %226 = vmatpush1.msra.mxu0 0.0
      %227 = vmatprep.subr.mxu0 0.0
      %228 = vmatpush1.msra.mxu0 0.0
      %229 = vmatprep.subr.mxu0 0.0
      %230 = vmatpush1.msra.mxu0 0.0
      %231 = vmatprep.subr.mxu0 0.0
      %232 = vmatpush1.msra.mxu0 0.0
      %233 = vmatprep.subr.mxu0 0.0
      %234 = vmatpush1.msra.mxu0 0.0
      %235 = vmatprep.subr.mxu0 0.0
      %236 = vmatpush1.msra.mxu0 0.0
      %237 = vmatprep.subr.mxu0 0.0
      %238 = vmatpush1.msra.mxu0 %v205
      %239 = vmatprep.subr.mxu0 0.0
      %240 = vmatpush2.msra.mxu0 0.0
      %241 = vmatprep.subr.mxu0 0.0
      %242 = vmatpush2.msra.mxu0 0.0
      %243 = vmatprep.subr.mxu0 0.0
      %244 = vmatpush2.msra.mxu0 0.0
      %245 = vmatprep.subr.mxu0 0.0
      %246 = vmatpush2.msra.mxu0 0.0
      %247 = vmatprep.subr.mxu0 0.0
      %248 = vmatpush2.msra.mxu0 0.0
      %249 = vmatprep.subr.mxu0 0.0
      %250 = vmatpush2.msra.mxu0 0.0
      %251 = vmatprep.subr.mxu0 0.0
      %252 = vmatpush2.msra.mxu0 0.0
      %253 = vmatprep.subr.mxu0 0.0
      %254 = vmatpush2.msra.mxu0 0.0
      %255 = vmatprep.subr.mxu0 0.0
      %256 = vmatpush2.msra.mxu0 0.0
      %257 = vmatprep.subr.mxu0 0.0
      %258 = vmatpush2.msra.mxu0 0.0
      %259 = vmatprep.subr.mxu0 0.0
      %260 = vmatpush2.msra.mxu0 0.0
      %261 = vmatprep.subr.mxu0 0.0
      %262 = vmatpush2.msra.mxu0 0.0
      %263 = vmatprep.subr.mxu0 0.0
      %264 = vmatpush2.msra.mxu0 0.0
      %265 = vmatprep.subr.mxu0 0.0
      %266 = vmatpush2.msra.mxu0 0.0
      %267 = vmatprep.subr.mxu0 0.0
      %268 = vmatpush2.msra.mxu0 0.0
      %269 = vmatprep.subr.mxu0 0.0
      %270 = vmatpush2.msra.mxu0 0.0
      %271 = vmatprep.mubr.f32.mxu0 0.0
      %272 = vmatmul.mubr.f32.gmra.mxu0 %v202
      %v273 = vpop.f32.mrf.mxu0
      %v274 = vadd.f32 0.0, %v273
      %v275 = vpop.f32.mrf.mxu0
      %276 = vdwg.mxu0
      %v277 = vadd.f32 %v179, %v274
      %vm278 = vcmask 1041408
      %v279 = vsel %vm278, %v277, -inf
      %280 = vmax.xlane.f32.xlu0 %v279
      %v281 = vpop.xlane.xlu0 %280
      %v282 = vsub.f32 %v277, %v281
      %v283 = vmul.f32 %v282, 1.442695
      %v284 = vpow.pop %v283
      %v285 = vsel %vm278, %v284, 0.0
      %286 = vadd.xlane.f32.xlu0 %v285
      %v287 = vpop.xlane.xlu0 %286
      %v288 = vrcp.pop %v287
      %v289 = vmul.f32 %v287, %v288
      %v290 = vsub.f32 2.0, %v289
      %v291 = vmul.f32 %v288, %v290
      %v292 = vmul.f32 %v284, %v291
      %293 = vst [vmem:[#allocation4] sm:$0x3] %v292
    $region33: #{resnet_basic_head.1} parent=1 // pred_fallthru
      _
    // Predicated region
    $region34: #{resnet_basic_head.1} parent=1 // pred_check
      _
    $region35: #{resnet_basic_head.1} parent=1 // pred_check_branch
      %295 = sbr.rel (0) target = $region37
    $region36: #{resnet_basic_head.1} parent=1 // pred_region
      %s297 = ssub.s32 32, 32
      %298 = vsyncadd [#allocation5], %s297
      %s300 = sshll.u32 [#allocation4], 4
      %s301 = int_to_ptr.vmem [resolvable:$true] %s300
      %303 = dma.vmem_to_hbm [thread:$0]  %s301, 32, %s5, [#allocation5]
    $region37: #{resnet_basic_head.1} parent=1 // pred_fallthru
      _
    // Predicated region
    $region38: #{resnet_basic_head.1} parent=1 // pred_check
      _
    $region39: #{resnet_basic_head.1} parent=1 // pred_check_branch
      %305 = sbr.rel (0) target = $region41
    $region40: #{resnet_basic_head.1} parent=1 // pred_region
      %306 = dma.done [#allocation5], 32
    $region41: #{resnet_basic_head.1} parent=1 // pred_fallthru
      _
    %307 = vsyncpa [#allocation5], 1

</llo_original>
